<compile_context>
chip_gen: v7x
topology: tpu7x:2x2x1
jax: 0.10.0
libtpu: 0.0.40
codegen_flags: <defaults>
</compile_context>

<pallas_src>
import functools
import math

import jax
import jax.numpy as jnp
import numpy as np
from jax.experimental import pallas as pl
from jax.experimental.pallas import tpu as pltpu


# ----------------------------- in-kernel helpers -----------------------------

_SQRT_HALF = 1.0 / math.sqrt(2.0)
_TANH_C = math.sqrt(2.0 / math.pi)


def _erf_approx(x):
    # Abramowitz & Stegun 7.1.26, |err| <= 1.5e-7 (f32-exact for GELU purposes).
    a1, a2, a3, a4, a5 = 0.254829592, -0.284496736, 1.421413741, -1.453152027, 1.061405429
    p = 0.3275911
    s = jnp.where(x >= 0.0, 1.0, -1.0)
    z = jnp.abs(x)
    t = 1.0 / (1.0 + p * z)
    poly = ((((a5 * t + a4) * t + a3) * t + a2) * t + a1) * t
    return s * (1.0 - poly * jnp.exp(-z * z))        # exp -> EUP slot


def _gelu(x, approximate):
    if approximate:
        # tanh-approximate GELU: transcendental goes to the EUP slot, ~2x fewer VPU ops.
        return 0.5 * x * (1.0 + jnp.tanh(_TANH_C * (x + 0.044715 * x * x * x)))
    return 0.5 * x * (1.0 + _erf_approx(x * _SQRT_HALF))


# --------------------------------- the kernel --------------------------------

def _mlp_kernel(x_ref, wfc_ref, bfc_ref, wproj_ref, bproj_ref, o_ref, *scratch,
                compute_dtype, approximate):
    """One (tm, C) row tile; reduction over hidden tiles on grid axis 1.

    If no scratch is passed, the output block itself (f32, resident across the
    hidden axis) is used as the accumulator.
    """
    use_scratch = bool(scratch)                  # static at trace time
    acc_ref = scratch[0] if use_scratch else o_ref
    h = pl.program_id(1)

    @pl.when(h == 0)
    def _():
        # Fold the c_proj bias into the accumulator init.
        acc_ref[...] = jnp.broadcast_to(
            bproj_ref[...].astype(acc_ref.dtype), acc_ref.shape)

    # In-kernel cast of the activation tile (x stays f32/bf16 in HBM untouched).
    xa = x_ref[...].astype(compute_dtype)

    # c_fc partial: (tm, C) @ (C, th) -> f32 (MXU, f32 accumulation)
    a = jnp.dot(xa, wfc_ref[...], preferred_element_type=jnp.float32)
    a = a + bfc_ref[...].astype(jnp.float32)

    # GELU in f32 (EUP transcendental + VPU polynomial)
    a = _gelu(a, approximate)

    # c_proj partial: (tm, th) @ (th, C), accumulated in f32
    part = jnp.dot(a.astype(compute_dtype), wproj_ref[...],
                   preferred_element_type=jnp.float32)
    acc_ref[...] += part.astype(acc_ref.dtype)

    if use_scratch:
        @pl.when(h == pl.num_programs(1) - 1)
        def _():
            o_ref[...] = acc_ref[...].astype(o_ref.dtype)


# ------------------------------ tile selection --------------------------------

def _round_up(x, m):
    return ((x + m - 1) // m) * m


def _vmem_capacity_bytes():
    try:
        info = pltpu.get_tpu_info()
        cap = getattr(info, "vmem_capacity_bytes", None)
        if cap:
            return int(cap)
    except Exception:
        pass
    return 64 * 1024 * 1024        # conservative fallback: v7x per-TensorCore VMEM


def _select_tiles(M, C, H, x_bytes, w_bytes, out_bytes, use_scratch, budget, tm_pref):
    """Largest (tm, th) that fits the per-generation VMEM budget (biggest AI)."""
    m_cap = _round_up(M, 8)
    tm_cands = sorted({t for t in (tm_pref, 1024, 512, 256, 128, 64, 32, 16, 8)
                       if 0 < t <= m_cap}, reverse=True)
    if not tm_cands:
        tm_cands = [m_cap]
    th_cands = [t for t in (512, 256, 128) if t <= H and H % t == 0]
    if not th_cands:
        th_cands = [H]

    for tm in tm_cands:                      # prefer big tm: AI ~ tm FLOP / weight byte
        for th in th_cands:                  # prefer th=512 (lane-dense weight DMA, 256-wide MXU)
            need = (2 * tm * C * x_bytes                      # x tile, double-buffered
                    + 2 * tm * C * out_bytes                  # out tile, double-buffered
                    + (4 * tm * C if use_scratch else 0)      # f32 accumulator scratch
                    + 2 * 2 * C * th * w_bytes                # Wfc + Wproj, double-buffered
                    + 4 * (th + C) * 4)                       # biases (f32)
            if need <= budget:
                return tm, th
    return tm_cands[-1], th_cands[-1]


# --------------------------------- wrapper -----------------------------------

def mlp_forward(x, wfc, bfc, wproj, bproj, *, compute_dtype=jnp.bfloat16,
                tm=512, approximate_gelu=False):
    """y = GELU(x @ wfc + bfc) @ wproj + bproj  (dropout eval-mode identity).

    Weights are (in_features, out_features), i.e. nn.Linear weight transposed.
    The activation is cast to `compute_dtype` per tile inside the kernel; for best
    performance store the weights pre-cast to `compute_dtype` (they are cast here
    once per call otherwise).  Accumulation is f32; output keeps x's dtype.
    """
    orig_shape = x.shape
    out_dtype = x.dtype
    C = x.shape[-1]
    H = wfc.shape[1]
    assert wfc.shape == (C, H) and wproj.shape == (H, C)

    if compute_dtype is None:
        compute_dtype = x.dtype
    if wfc.dtype != compute_dtype:
        wfc = wfc.astype(compute_dtype)
    if wproj.dtype != compute_dtype:
        wproj = wproj.astype(compute_dtype)
    bfc2d = bfc.reshape(1, H).astype(jnp.float32)
    bproj2d = bproj.reshape(1, C).astype(jnp.float32)

    x2d = x.reshape(-1, C)
    M = x2d.shape[0]

    # Accumulate directly into the resident f32 output block; scratch only otherwise.
    use_scratch = out_dtype != jnp.float32

    x_bytes = jnp.dtype(x.dtype).itemsize
    w_bytes = jnp.dtype(compute_dtype).itemsize
    out_bytes = jnp.dtype(out_dtype).itemsize

    # Generation-aware VMEM budget: ~52 MiB on v7x (64 MiB/TC), ~100 MiB on v5e/v6e.
    vmem_cap = _vmem_capacity_bytes()
    vmem_limit = min(int(vmem_cap * 0.82), 100 * 1024 * 1024)
    tile_budget = vmem_limit - (2 << 20)      # headroom for compiler-internal scratch

    tm, th = _select_tiles(M, C, H, x_bytes, w_bytes, out_bytes,
                           use_scratch, tile_budget, tm)

    # Pad M up to a multiple of tm (masked tail rows; < 1 tile of wasted compute)
    # instead of silently collapsing to tiny row tiles.
    M_pad = _round_up(M, tm)
    if M_pad != M:
        x2d = jnp.pad(x2d, ((0, M_pad - M), (0, 0)))

    grid = (M_pad // tm, H // th)

    kernel = functools.partial(_mlp_kernel, compute_dtype=compute_dtype,
                               approximate=approximate_gelu)
    scratch_shapes = [pltpu.VMEM((tm, C), jnp.float32)] if use_scratch else []

    out2d = pl.pallas_call(
        kernel,
        out_shape=jax.ShapeDtypeStruct((M_pad, C), out_dtype),
        grid_spec=pltpu.PrefetchScalarGridSpec(
            num_scalar_prefetch=0,
            grid=grid,
            in_specs=[
                pl.BlockSpec((tm, C), lambda i, h: (i, 0)),    # x rows (reused across h)
                pl.BlockSpec((C, th), lambda i, h: (0, h)),    # Wfc column tile
                pl.BlockSpec((1, th), lambda i, h: (0, h)),    # bfc tile
                pl.BlockSpec((th, C), lambda i, h: (h, 0)),    # Wproj row tile
                pl.BlockSpec((1, C), lambda i, h: (0, 0)),     # bproj (grid-invariant)
            ],
            out_specs=pl.BlockSpec((tm, C), lambda i, h: (i, 0)),
            scratch_shapes=scratch_shapes,
        ),
        compiler_params=pltpu.CompilerParams(
            dimension_semantics=("parallel", "arbitrary"),
            vmem_limit_bytes=vmem_limit,
        ),
    )(x2d, wfc, bfc2d, wproj, bproj2d)

    if M_pad != M:
        out2d = out2d[:M]
    return out2d.reshape(orig_shape)


# ------------------------------ pure-JAX reference ----------------------------

def ref_mlp(x, wfc, bfc, wproj, bproj):
    a = jax.nn.gelu(x @ wfc + bfc, approximate=False)
    return a @ wproj + bproj


# ----------------------------------- main -------------------------------------

if __name__ == "__main__":
    B, T, C = 2, 8, 32
    H = 4 * C
    n_layers = 1
    init_residual_scaled_factor = 2.0

    key = jax.random.PRNGKey(0)
    k = jax.random.split(key, 5)

    std_fc = 1.0 / math.sqrt(C)
    std_proj = (1.0 / math.sqrt(H)) / math.sqrt(init_residual_scaled_factor * n_layers)

    wfc = std_fc * jax.random.normal(k[0], (C, H), jnp.float32)
    bfc = 0.02 * jax.random.normal(k[1], (H,), jnp.float32)     # nonzero to exercise bias path
    wproj = std_proj * jax.random.normal(k[2], (H, C), jnp.float32)
    bproj = 0.02 * jax.random.normal(k[3], (C,), jnp.float32)
    x = jax.random.normal(k[4], (B, T, C), jnp.float32)

    ref = jax.block_until_ready(ref_mlp(x, wfc, bfc, wproj, bproj))

    # 1) f32 compute, exact GELU, direct-accumulate-into-output path: tight check.
    out_f32 = jax.block_until_ready(
        mlp_forward(x, wfc, bfc, wproj, bproj, compute_dtype=jnp.float32))
    np.testing.assert_allclose(np.asarray(out_f32), np.asarray(ref), rtol=1e-4, atol=1e-4)

    # 2) Default bf16 MXU path (in-kernel activation cast, f32 accumulation): loose check.
    out_bf16 = jax.block_until_ready(mlp_forward(x, wfc, bfc, wproj, bproj))
    np.testing.assert_allclose(np.asarray(out_bf16), np.asarray(ref), rtol=6e-2, atol=6e-2)

    # 3) bf16 activations in/out (exercises the scratch-accumulator path).
    x_bf16 = x.astype(jnp.bfloat16)
    out_b = jax.block_until_ready(mlp_forward(x_bf16, wfc, bfc, wproj, bproj))
    np.testing.assert_allclose(np.asarray(out_b).astype(np.float32), np.asarray(ref),
                               rtol=8e-2, atol=8e-2)

    # 4) tanh-approximate GELU fast path (small-C / v5e VALU-bound regime).
    out_t = jax.block_until_ready(
        mlp_forward(x, wfc, bfc, wproj, bproj, compute_dtype=jnp.float32,
                    approximate_gelu=True))
    np.testing.assert_allclose(np.asarray(out_t), np.asarray(ref), rtol=2e-2, atol=2e-2)

    print("KERNEL_OK")
</pallas_src>

<mosaic_0001>
module attributes {stable_mosaic.version = 11 : i64} {
  func.func @_mlp_kernel(%arg0: i32, %arg1: i32, %arg2: memref<16x32xf32, #tpu.memory_space<vmem>>, %arg3: memref<32x128xf32, #tpu.memory_space<vmem>>, %arg4: memref<1x128xf32, #tpu.memory_space<vmem>>, %arg5: memref<128x32xf32, #tpu.memory_space<vmem>>, %arg6: memref<1x32xf32, #tpu.memory_space<vmem>>, %arg7: memref<16x32xf32, #tpu.memory_space<vmem>>) attributes {dimension_semantics = [#tpu.dimension_semantics<parallel>, #tpu.dimension_semantics<arbitrary>], iteration_bounds = array<i64: 1, 1>, scalar_prefetch = 0 : i64, scratch_operands = 0 : i64, tpu.core_type = #tpu.core_type<tc>, window_params = [{transform_indices = @transform_0, window_bounds = array<i64: 16, 32>}, {transform_indices = @transform_1, window_bounds = array<i64: 32, 128>}, {transform_indices = @transform_2, window_bounds = array<i64: 1, 128>}, {transform_indices = @transform_3, window_bounds = array<i64: 128, 32>}, {pipeline_mode = #tpu.pipeline_mode<synchronous>, transform_indices = @transform_4, window_bounds = array<i64: 1, 32>}, {transform_indices = @transform_5, window_bounds = array<i64: 16, 32>}]} {
    %c0_i32 = arith.constant 0 : i32
    %0 = arith.cmpi eq, %arg1, %c0_i32 : i32
    %1 = arith.extui %0 : i1 to i32
    %c0_i32_0 = arith.constant 0 : i32
    %2 = arith.cmpi ne, %1, %c0_i32_0 : i32
    scf.if %2 {
      %c0_29 = arith.constant 0 : index
      %c0_30 = arith.constant 0 : index
      %55 = vector.load %arg6[%c0_29, %c0_30] : memref<1x32xf32, #tpu.memory_space<vmem>>, vector<1x32xf32>
      %56 = vector.shape_cast %55 : vector<1x32xf32> to vector<1x32xf32>
      %57 = vector.broadcast %56 : vector<1x32xf32> to vector<16x32xf32>
      %c0_31 = arith.constant 0 : index
      %c0_32 = arith.constant 0 : index
      %58 = vector.load %arg7[%c0_31, %c0_32] : memref<16x32xf32, #tpu.memory_space<vmem>>, vector<16x32xf32>
      tpu.vector_store %arg7[%c0_31, %c0_32], %57 {strides = array<i32>} : memref<16x32xf32, #tpu.memory_space<vmem>>, vector<16x32xf32>,
    } else {
    }
    %c0 = arith.constant 0 : index
    %c0_1 = arith.constant 0 : index
    %3 = vector.load %arg2[%c0, %c0_1] : memref<16x32xf32, #tpu.memory_space<vmem>>, vector<16x32xf32>
    %c0_2 = arith.constant 0 : index
    %c0_3 = arith.constant 0 : index
    %4 = vector.load %arg3[%c0_2, %c0_3] : memref<32x128xf32, #tpu.memory_space<vmem>>, vector<32x128xf32>
    %cst = arith.constant dense<0.000000e+00> : vector<16x128xf32>
    %5 = tpu.matmul %3, %4, %cst {dimension_numbers = #tpu.dot_dimension_numbers<[1], [0], [0], [1], [0, 0, 1, 1], [], []>} : vector<16x32xf32>, vector<32x128xf32>, vector<16x128xf32> -> vector<16x128xf32>
    %c0_4 = arith.constant 0 : index
    %c0_5 = arith.constant 0 : index
    %6 = vector.load %arg4[%c0_4, %c0_5] : memref<1x128xf32, #tpu.memory_space<vmem>>, vector<1x128xf32>
    %7 = vector.broadcast %6 : vector<1x128xf32> to vector<16x128xf32>
    %8 = arith.addf %5, %7 : vector<16x128xf32>
    %cst_6 = arith.constant 5.000000e-01 : f32
    %9 = vector.broadcast %cst_6 : f32 to vector<16x128xf32>
    %10 = arith.mulf %9, %8 : vector<16x128xf32>
    %cst_7 = arith.constant 0.707106769 : f32
    %11 = vector.broadcast %cst_7 : f32 to vector<16x128xf32>
    %12 = arith.mulf %8, %11 : vector<16x128xf32>
    %cst_8 = arith.constant 0.000000e+00 : f32
    %13 = vector.broadcast %cst_8 : f32 to vector<16x128xf32>
    %14 = arith.cmpf oge, %12, %13 : vector<16x128xf32>
    %cst_9 = arith.constant 1.000000e+00 : f32
    %cst_10 = arith.constant -1.000000e+00 : f32
    %15 = vector.broadcast %cst_9 : f32 to vector<16x128xf32>
    %16 = vector.broadcast %cst_10 : f32 to vector<16x128xf32>
    %17 = arith.select %14, %15, %16 : vector<16x128xi1>, vector<16x128xf32>
    %18 = math.absf %12 : vector<16x128xf32>
    %cst_11 = arith.constant 0.327591091 : f32
    %19 = vector.broadcast %cst_11 : f32 to vector<16x128xf32>
    %20 = arith.mulf %19, %18 : vector<16x128xf32>
    %cst_12 = arith.constant 1.000000e+00 : f32
    %21 = vector.broadcast %cst_12 : f32 to vector<16x128xf32>
    %22 = arith.addf %21, %20 : vector<16x128xf32>
    %cst_13 = arith.constant 1.000000e+00 : f32
    %23 = vector.broadcast %cst_13 : f32 to vector<16x128xf32>
    %24 = arith.divf %23, %22 : vector<16x128xf32>
    %cst_14 = arith.constant 1.06140542 : f32
    %25 = vector.broadcast %cst_14 : f32 to vector<16x128xf32>
    %26 = arith.mulf %25, %24 : vector<16x128xf32>
    %cst_15 = arith.constant -1.45315206 : f32
    %27 = vector.broadcast %cst_15 : f32 to vector<16x128xf32>
    %28 = arith.addf %26, %27 : vector<16x128xf32>
    %29 = arith.mulf %28, %24 : vector<16x128xf32>
    %cst_16 = arith.constant 1.42141378 : f32
    %30 = vector.broadcast %cst_16 : f32 to vector<16x128xf32>
    %31 = arith.addf %29, %30 : vector<16x128xf32>
    %32 = arith.mulf %31, %24 : vector<16x128xf32>
    %cst_17 = arith.constant -0.284496725 : f32
    %33 = vector.broadcast %cst_17 : f32 to vector<16x128xf32>
    %34 = arith.addf %32, %33 : vector<16x128xf32>
    %35 = arith.mulf %34, %24 : vector<16x128xf32>
    %cst_18 = arith.constant 0.254829586 : f32
    %36 = vector.broadcast %cst_18 : f32 to vector<16x128xf32>
    %37 = arith.addf %35, %36 : vector<16x128xf32>
    %38 = arith.mulf %37, %24 : vector<16x128xf32>
    %cst_19 = arith.constant 0.000000e+00 : f32
    %39 = vector.broadcast %cst_19 : f32 to vector<16x128xf32>
    %40 = arith.subf %39, %18 : vector<16x128xf32>
    %41 = arith.mulf %40, %18 : vector<16x128xf32>
    %42 = math.exp %41 : vector<16x128xf32>
    %43 = arith.mulf %38, %42 : vector<16x128xf32>
    %cst_20 = arith.constant 1.000000e+00 : f32
    %44 = vector.broadcast %cst_20 : f32 to vector<16x128xf32>
    %45 = arith.subf %44, %43 : vector<16x128xf32>
    %46 = arith.mulf %17, %45 : vector<16x128xf32>
    %cst_21 = arith.constant 1.000000e+00 : f32
    %47 = vector.broadcast %cst_21 : f32 to vector<16x128xf32>
    %48 = arith.addf %47, %46 : vector<16x128xf32>
    %49 = arith.mulf %10, %48 : vector<16x128xf32>
    %c0_22 = arith.constant 0 : index
    %c0_23 = arith.constant 0 : index
    %50 = vector.load %arg5[%c0_22, %c0_23] : memref<128x32xf32, #tpu.memory_space<vmem>>, vector<128x32xf32>
    %cst_24 = arith.constant dense<0.000000e+00> : vector<16x32xf32>
    %51 = tpu.matmul %49, %50, %cst_24 {dimension_numbers = #tpu.dot_dimension_numbers<[1], [0], [0], [1], [0, 0, 1, 1], [], []>} : vector<16x128xf32>, vector<128x32xf32>, vector<16x32xf32> -> vector<16x32xf32>
    %c0_25 = arith.constant 0 : index
    %c0_26 = arith.constant 0 : index
    %52 = vector.load %arg7[%c0_25, %c0_26] : memref<16x32xf32, #tpu.memory_space<vmem>>, vector<16x32xf32>
    %53 = arith.addf %52, %51 : vector<16x32xf32>
    %c0_27 = arith.constant 0 : index
    %c0_28 = arith.constant 0 : index
    %54 = vector.load %arg7[%c0_27, %c0_28] : memref<16x32xf32, #tpu.memory_space<vmem>>, vector<16x32xf32>
    tpu.vector_store %arg7[%c0_27, %c0_28], %53 {strides = array<i32>} : memref<16x32xf32, #tpu.memory_space<vmem>>, vector<16x32xf32>,
    return
  }
  func.func @transform_0(%arg0: i32, %arg1: i32) -> (i32, i32) {
    %c0_i32 = arith.constant 0 : i32
    %c0_i32_0 = arith.constant 0 : i32
    return %arg0, %c0_i32 : i32, i32
  }
  func.func @transform_1(%arg0: i32, %arg1: i32) -> (i32, i32) {
    %c0_i32 = arith.constant 0 : i32
    %c0_i32_0 = arith.constant 0 : i32
    return %c0_i32, %arg1 : i32, i32
  }
  func.func @transform_2(%arg0: i32, %arg1: i32) -> (i32, i32) {
    %c0_i32 = arith.constant 0 : i32
    %c0_i32_0 = arith.constant 0 : i32
    return %c0_i32, %arg1 : i32, i32
  }
  func.func @transform_3(%arg0: i32, %arg1: i32) -> (i32, i32) {
    %c0_i32 = arith.constant 0 : i32
    %c0_i32_0 = arith.constant 0 : i32
    return %arg1, %c0_i32 : i32, i32
  }
  func.func @transform_4(%arg0: i32, %arg1: i32) -> (i32, i32) {
    %c0_i32 = arith.constant 0 : i32
    %c0_i32_0 = arith.constant 0 : i32
    %c0_i32_1 = arith.constant 0 : i32
    return %c0_i32, %c0_i32_0 : i32, i32
  }
  func.func @transform_5(%arg0: i32, %arg1: i32) -> (i32, i32) {
    %c0_i32 = arith.constant 0 : i32
    %c0_i32_0 = arith.constant 0 : i32
    return %arg0, %c0_i32 : i32, i32
  }
}

</mosaic_0001>

<llo_original>
// kernel: tpu_custom_call.1
$region0: #{tpu_custom_call.1}
  #allocation0 [shape = 'u32[]', space=smem, size = 0x4, offset = 0x4, fixed_abs, tag = 'smem constant byte address 0x4 - core index']
  #allocation1 [shape = 'u32[144,128]{1,0:T(1,128)}', space=vmem, size = 0x12000, scoped, tag = 'internal scratch']
  %s0 = inlined_call_operand.vmem [shape: f32[16,32], index: 0, kind: input, shape index: {}]
  %s1 = inlined_call_operand.vmem [shape: f32[32,128], index: 1, kind: input, shape index: {}]
  %s2 = inlined_call_operand.vmem [shape: f32[1,128], index: 2, kind: input, shape index: {}]
  %s3 = inlined_call_operand.vmem [shape: f32[128,32], index: 3, kind: input, shape index: {}]
  %s4 = inlined_call_operand.vmem [shape: f32[1,32], index: 4, kind: input, shape index: {}]
  %s5 = inlined_call_operand.hbm [shape: f32[16,32], index: 5, kind: output, shape index: {}]
  %s6 = sld [smem:[#allocation0]]
  $region34: #{tpu_custom_call.1} parent=0
    _
  %s8 = ssub.s32 1, %s6
  %s9 = scalar_select 0, %s8, %s6
  $region1: #{tpu_custom_call.1} parent=0
    #allocation2 [shape = 'u8[8192]{0}', space=vmem, size = 0x2000, scoped, tag = 'output window, operand 0, single buffered']
    #allocation3 [shape = 's32[1]{0}', space=sflag, size = 0x4, scoped, tag = 'scoped memory for tpu_custom_call.1']
    %10 = vsyncpa [#allocation3], 0
    // Predicated region
    $region2: #{tpu_custom_call.1} parent=1 // pred_check
      _
    $region3: #{tpu_custom_call.1} parent=1 // pred_check_branch
      %12 = sbr.rel (0) target = $region5
    $region4: #{tpu_custom_call.1} parent=1 // pred_region
      _
    $region5: #{tpu_custom_call.1} parent=1 // pred_fallthru
      _
    // Predicated region
    $region6: #{tpu_custom_call.1} parent=1 // pred_check
      _
    $region7: #{tpu_custom_call.1} parent=1 // pred_check_branch
      %14 = sbr.rel (0) target = $region9
    $region8: #{tpu_custom_call.1} parent=1 // pred_region
      _
    $region9: #{tpu_custom_call.1} parent=1 // pred_fallthru
      _
    // Predicated region
    $region10: #{tpu_custom_call.1} parent=1 // pred_check
      _
    $region11: #{tpu_custom_call.1} parent=1 // pred_check_branch
      %16 = sbr.rel (0) target = $region13
    $region12: #{tpu_custom_call.1} parent=1 // pred_region
      _
    $region13: #{tpu_custom_call.1} parent=1 // pred_fallthru
      _
    // Predicated region
    $region14: #{tpu_custom_call.1} parent=1 // pred_check
      _
    $region15: #{tpu_custom_call.1} parent=1 // pred_check_branch
      %18 = sbr.rel (0) target = $region17
    $region16: #{tpu_custom_call.1} parent=1 // pred_region
      _
    $region17: #{tpu_custom_call.1} parent=1 // pred_fallthru
      _
    // Predicated region
    $region18: #{tpu_custom_call.1} parent=1 // pred_check
      _
    $region19: #{tpu_custom_call.1} parent=1 // pred_check_branch
      %20 = sbr.rel (0) target = $region21
    $region20: #{tpu_custom_call.1} parent=1 // pred_region
      _
    $region21: #{tpu_custom_call.1} parent=1 // pred_fallthru
      _
    %p21 = scmp.eq.s32.totalorder 0, 0
    // Predicated region
    $region22: #{tpu_custom_call.1} parent=1 // pred_check
      %p22 = pneg %p21
    $region23: #{tpu_custom_call.1} parent=1 // pred_check_branch
      %24 = sbr.rel (%p22) target = $region25
    $region24: #{tpu_custom_call.1} parent=1 // pred_region
      %v25 = vld [vmem:[%s4] sm:$0x1]
      %v27 = vlaneseq
      %v28 = vshrl.u32 %v27, 7
      %v29 = vsub.s32 0, %v28
      %v30 = vrot.slane %v25, %v29
      %vm32 = vcmask 261120
      %33 = vst.msk [vmem:[#allocation2] sm:$0xff] %vm32, %v30
      %34 = vst.msk [vmem:[#allocation2 + $0x8] sm:$0xff] %vm32, %v30
    $region25: #{tpu_custom_call.1} parent=1 // pred_fallthru
      _
    %v35 = vld [vmem:[%s0] sm:$0xff]
    %v36 = vld [vmem:[%s0 + $0x8] sm:$0xff]
    %v37 = vld [vmem:[%s1] sm:$0xff]
    %v38 = vld [vmem:[%s1 + $0x8] sm:$0xff]
    %v39 = vld [vmem:[%s1 + $0x10] sm:$0xff]
    %v40 = vld [vmem:[%s1 + $0x18] sm:$0xff]
    %v41 = vld [vmem:[%s2] sm:$0x1]
    %v43 = vlaneseq
    %v44 = vshrl.u32 %v43, 7
    %v45 = vsub.s32 0, %v44
    %v46 = vrot.slane %v41, %v45
    %vm48 = vcmask 261120
    %v50 = vsel %vm48, %v35, 0
    %v53 = vsel %vm48, %v36, 0
    %55 = vmatprep.subr.mxu0 0.0
    %56 = vmatpush1.msra.mxu0 %v37
    %57 = vmatprep.subr.mxu0 0.0
    %58 = vmatpush1.msra.mxu0 %v38
    %59 = vmatprep.subr.mxu0 0.0
    %60 = vmatpush1.msra.mxu0 %v39
    %61 = vmatprep.subr.mxu0 0.0
    %62 = vmatpush1.msra.mxu0 %v40
    %63 = vmatprep.subr.mxu0 0.0
    %64 = vmatpush1.msra.mxu0 0.0
    %65 = vmatprep.subr.mxu0 0.0
    %66 = vmatpush1.msra.mxu0 0.0
    %67 = vmatprep.subr.mxu0 0.0
    %68 = vmatpush1.msra.mxu0 0.0
    %69 = vmatprep.subr.mxu0 0.0
    %70 = vmatpush1.msra.mxu0 0.0
    %71 = vmatprep.subr.mxu0 0.0
    %72 = vmatpush1.msra.mxu0 0.0
    %73 = vmatprep.subr.mxu0 0.0
    %74 = vmatpush1.msra.mxu0 0.0
    %75 = vmatprep.subr.mxu0 0.0
    %76 = vmatpush1.msra.mxu0 0.0
    %77 = vmatprep.subr.mxu0 0.0
    %78 = vmatpush1.msra.mxu0 0.0
    %79 = vmatprep.subr.mxu0 0.0
    %80 = vmatpush1.msra.mxu0 0.0
    %81 = vmatprep.subr.mxu0 0.0
    %82 = vmatpush1.msra.mxu0 0.0
    %83 = vmatprep.subr.mxu0 0.0
    %84 = vmatpush1.msra.mxu0 0.0
    %85 = vmatprep.subr.mxu0 0.0
    %86 = vmatpush1.msra.mxu0 0.0
    %87 = vmatprep.subr.mxu0 0.0
    %88 = vmatpush1.msra.mxu0 0.0
    %89 = vmatprep.subr.mxu0 0.0
    %90 = vmatpush1.msra.mxu0 0.0
    %91 = vmatprep.subr.mxu0 0.0
    %92 = vmatpush1.msra.mxu0 0.0
    %93 = vmatprep.subr.mxu0 0.0
    %94 = vmatpush1.msra.mxu0 0.0
    %95 = vmatprep.subr.mxu0 0.0
    %96 = vmatpush1.msra.mxu0 0.0
    %97 = vmatprep.subr.mxu0 0.0
    %98 = vmatpush1.msra.mxu0 0.0
    %99 = vmatprep.subr.mxu0 0.0
    %100 = vmatpush1.msra.mxu0 0.0
    %101 = vmatprep.subr.mxu0 0.0
    %102 = vmatpush1.msra.mxu0 0.0
    %103 = vmatprep.subr.mxu0 0.0
    %104 = vmatpush1.msra.mxu0 0.0
    %105 = vmatprep.subr.mxu0 0.0
    %106 = vmatpush1.msra.mxu0 0.0
    %107 = vmatprep.subr.mxu0 0.0
    %108 = vmatpush1.msra.mxu0 0.0
    %109 = vmatprep.subr.mxu0 0.0
    %110 = vmatpush1.msra.mxu0 0.0
    %111 = vmatprep.subr.mxu0 0.0
    %112 = vmatpush1.msra.mxu0 0.0
    %113 = vmatprep.subr.mxu0 0.0
    %114 = vmatpush1.msra.mxu0 0.0
    %115 = vmatprep.subr.mxu0 0.0
    %116 = vmatpush1.msra.mxu0 0.0
    %117 = vmatprep.subr.mxu0 0.0
    %118 = vmatpush1.msra.mxu0 0.0
    %119 = vmatprep.mubr.f32.mxu0 0.0
    %120 = vmatmul.mubr.f32.gmra.mrb[0].mxu0 %v50
    %v121 = vpop.f32.mrb[0].mxu0
    %v122 = vadd.f32 %v46, %v121
    %v123 = vpop.f32.mrb[0].mxu0
    %124 = vmatprep.mubr.f32.mxu0 0.0
    %125 = vmatmul.mubr.f32.gmra.mrb[0].mxu0 %v53
    %v126 = vpop.f32.mrb[0].mxu0
    %v127 = vadd.f32 %v46, %v126
    %v128 = vpop.f32.mrb[0].mxu0
    %129 = vdwg.mxu0
    %v130 = vmul.f32 %v122, 0.5
    %v131 = vmul.f32 %v127, 0.5
    %v132 = vmul.f32 %v122, 0.70710677
    %v133 = vmul.f32 %v127, 0.70710677
    %vm134 = vcmp.ge.f32.partialorder %v132, 0.0
    %vm135 = vcmp.ge.f32.partialorder %v133, 0.0
    %v136 = vsel %vm134, 1.0, -1.0
    %v137 = vsel %vm135, 1.0, -1.0
    %v138 = vand.u32 2147483647, %v132
    %v139 = vand.u32 2147483647, %v133
    %v140 = vmul.f32 %v138, 0.3275911
    %v141 = vmul.f32 %v139, 0.3275911
    %v142 = vadd.f32 %v140, 1.0
    %v143 = vadd.f32 %v141, 1.0
    %v144 = vrcp.pop %v142
    %v145 = vmul.f32 1.0, %v144
    %v146 = vrcp.pop %v143
    %v147 = vmul.f32 1.0, %v146
    %v148 = vmul.f32 %v145, 1.0614054
    %v149 = vmul.f32 %v147, 1.0614054
    %v150 = vadd.f32 %v148, -1.4531521
    %v151 = vadd.f32 %v149, -1.4531521
    %v152 = vmul.f32 %v150, %v145
    %v153 = vmul.f32 %v151, %v147
    %v154 = vadd.f32 %v152, 1.4214138
    %v155 = vadd.f32 %v153, 1.4214138
    %v156 = vmul.f32 %v154, %v145
    %v157 = vmul.f32 %v155, %v147
    %v158 = vadd.f32 %v156, -0.28449672
    %v159 = vadd.f32 %v157, -0.28449672
    %v160 = vmul.f32 %v158, %v145
    %v161 = vmul.f32 %v159, %v147
    %v162 = vadd.f32 %v160, 0.2548296
    %v163 = vadd.f32 %v161, 0.2548296
    %v164 = vmul.f32 %v162, %v145
    %v165 = vmul.f32 %v163, %v147
    %v166 = vsub.f32 0.0, %v138
    %v167 = vsub.f32 0.0, %v139
    %v168 = vmul.f32 %v166, %v138
    %v169 = vmul.f32 %v167, %v139
    %v170 = vmul.f32 %v168, 1.442695
    %v171 = vpow.pop %v170
    %v172 = vmul.f32 %v169, 1.442695
    %v173 = vpow.pop %v172
    %v174 = vmul.f32 %v164, %v171
    %v175 = vmul.f32 %v165, %v173
    %v176 = vsub.f32 1.0, %v174
    %v177 = vsub.f32 1.0, %v175
    %v178 = vmul.f32 %v136, %v176
    %v179 = vmul.f32 %v137, %v177
    %v180 = vadd.f32 %v178, 1.0
    %v181 = vadd.f32 %v179, 1.0
    %v182 = vmul.f32 %v130, %v180
    %v183 = vmul.f32 %v131, %v181
    %v184 = vld [vmem:[%s3] sm:$0xff]
    %v185 = vld [vmem:[%s3 + $0x8] sm:$0xff]
    %v186 = vld [vmem:[%s3 + $0x10] sm:$0xff]
    %v187 = vld [vmem:[%s3 + $0x18] sm:$0xff]
    %v188 = vld [vmem:[%s3 + $0x20] sm:$0xff]
    %v189 = vld [vmem:[%s3 + $0x28] sm:$0xff]
    %v190 = vld [vmem:[%s3 + $0x30] sm:$0xff]
    %v191 = vld [vmem:[%s3 + $0x38] sm:$0xff]
    %v192 = vld [vmem:[%s3 + $0x40] sm:$0xff]
    %v193 = vld [vmem:[%s3 + $0x48] sm:$0xff]
    %v194 = vld [vmem:[%s3 + $0x50] sm:$0xff]
    %v195 = vld [vmem:[%s3 + $0x58] sm:$0xff]
    %v196 = vld [vmem:[%s3 + $0x60] sm:$0xff]
    %v197 = vld [vmem:[%s3 + $0x68] sm:$0xff]
    %v198 = vld [vmem:[%s3 + $0x70] sm:$0xff]
    %v199 = vld [vmem:[%s3 + $0x78] sm:$0xff]
    %200 = vmatprep.subr.mxu0 0.0
    %201 = vmatpush1.msra.mxu0 %v184
    %202 = vmatprep.subr.mxu0 0.0
    %203 = vmatpush1.msra.mxu0 %v185
    %204 = vmatprep.subr.mxu0 0.0
    %205 = vmatpush1.msra.mxu0 %v186
    %206 = vmatprep.subr.mxu0 0.0
    %207 = vmatpush1.msra.mxu0 %v187
    %208 = vmatprep.subr.mxu0 0.0
    %209 = vmatpush1.msra.mxu0 %v188
    %210 = vmatprep.subr.mxu0 0.0
    %211 = vmatpush1.msra.mxu0 %v189
    %212 = vmatprep.subr.mxu0 0.0
    %213 = vmatpush1.msra.mxu0 %v190
    %214 = vmatprep.subr.mxu0 0.0
    %215 = vmatpush1.msra.mxu0 %v191
    %216 = vmatprep.subr.mxu0 0.0
    %217 = vmatpush1.msra.mxu0 %v192
    %218 = vmatprep.subr.mxu0 0.0
    %219 = vmatpush1.msra.mxu0 %v193
    %220 = vmatprep.subr.mxu0 0.0
    %221 = vmatpush1.msra.mxu0 %v194
    %222 = vmatprep.subr.mxu0 0.0
    %223 = vmatpush1.msra.mxu0 %v195
    %224 = vmatprep.subr.mxu0 0.0
    %225 = vmatpush1.msra.mxu0 %v196
    %226 = vmatprep.subr.mxu0 0.0
    %227 = vmatpush1.msra.mxu0 %v197
    %228 = vmatprep.subr.mxu0 0.0
    %229 = vmatpush1.msra.mxu0 %v198
    %230 = vmatprep.subr.mxu0 0.0
    %231 = vmatpush1.msra.mxu0 %v199
    %232 = vmatprep.subr.mxu0 0.0
    %233 = vmatpush1.msra.mxu0 0.0
    %234 = vmatprep.subr.mxu0 0.0
    %235 = vmatpush1.msra.mxu0 0.0
    %236 = vmatprep.subr.mxu0 0.0
    %237 = vmatpush1.msra.mxu0 0.0
    %238 = vmatprep.subr.mxu0 0.0
    %239 = vmatpush1.msra.mxu0 0.0
    %240 = vmatprep.subr.mxu0 0.0
    %241 = vmatpush1.msra.mxu0 0.0
    %242 = vmatprep.subr.mxu0 0.0
    %243 = vmatpush1.msra.mxu0 0.0
    %244 = vmatprep.subr.mxu0 0.0
    %245 = vmatpush1.msra.mxu0 0.0
    %246 = vmatprep.subr.mxu0 0.0
    %247 = vmatpush1.msra.mxu0 0.0
    %248 = vmatprep.subr.mxu0 0.0
    %249 = vmatpush1.msra.mxu0 0.0
    %250 = vmatprep.subr.mxu0 0.0
    %251 = vmatpush1.msra.mxu0 0.0
    %252 = vmatprep.subr.mxu0 0.0
    %253 = vmatpush1.msra.mxu0 0.0
    %254 = vmatprep.subr.mxu0 0.0
    %255 = vmatpush1.msra.mxu0 0.0
    %256 = vmatprep.subr.mxu0 0.0
    %257 = vmatpush1.msra.mxu0 0.0
    %258 = vmatprep.subr.mxu0 0.0
    %259 = vmatpush1.msra.mxu0 0.0
    %260 = vmatprep.subr.mxu0 0.0
    %261 = vmatpush1.msra.mxu0 0.0
    %262 = vmatprep.subr.mxu0 0.0
    %263 = vmatpush1.msra.mxu0 0.0
    %264 = vmatprep.mubr.f32.mxu0 0.0
    %265 = vmatmul.mubr.f32.gmra.mrb[0].mxu0 %v182
    %v266 = vpop.f32.mrb[0].mxu0
    %v267 = vadd.f32 0.0, %v266
    %v268 = vpop.f32.mrb[0].mxu0
    %269 = vmatprep.mubr.f32.mxu0 0.0
    %270 = vmatmul.mubr.f32.gmra.mrb[0].mxu0 %v183
    %v271 = vpop.f32.mrb[0].mxu0
    %v272 = vadd.f32 0.0, %v271
    %v273 = vpop.f32.mrb[0].mxu0
    %274 = vdwg.mxu0
    %v275 = vld [vmem:[#allocation2] sm:$0xff]
    %v276 = vld [vmem:[#allocation2 + $0x8] sm:$0xff]
    %v277 = vadd.f32 %v275, %v267
    %v278 = vadd.f32 %v276, %v272
    %279 = vst.msk [vmem:[#allocation2] sm:$0xff] %vm48, %v277
    %280 = vst.msk [vmem:[#allocation2 + $0x8] sm:$0xff] %vm48, %v278
    // Predicated region
    $region26: #{tpu_custom_call.1} parent=1 // pred_check
      _
    $region27: #{tpu_custom_call.1} parent=1 // pred_check_branch
      %282 = sbr.rel (0) target = $region29
    $region28: #{tpu_custom_call.1} parent=1 // pred_region
      %s284 = ssub.s32 256, 256
      %285 = vsyncadd [#allocation3], %s284
      %s286 = sshll.u32 [#allocation2], 4
      %s287 = int_to_ptr.vmem [resolvable:$true] %s286
      %292 = dma.vmem_to_hbm [thread:$0]  %s287, 256, %s5, [#allocation3], 128, 128, 8
    $region29: #{tpu_custom_call.1} parent=1 // pred_fallthru
      _
    // Predicated region
    $region30: #{tpu_custom_call.1} parent=1 // pred_check
      _
    $region31: #{tpu_custom_call.1} parent=1 // pred_check_branch
      %294 = sbr.rel (0) target = $region33
    $region32: #{tpu_custom_call.1} parent=1 // pred_region
      %295 = dma.done [#allocation3], 256
    $region33: #{tpu_custom_call.1} parent=1 // pred_fallthru
      _
    %296 = vsyncpa [#allocation3], 1

</llo_original>
